<compile_context>
chip_gen: v7x
topology: tpu7x:2x2x1
jax: 0.10.0
libtpu: 0.0.40
codegen_flags: <defaults>
</compile_context>

<pallas_src>
import functools
import math

import jax
import jax.numpy as jnp
import numpy as np
from jax import lax
from jax.experimental import pallas as pl
from jax.experimental.pallas import tpu as pltpu

BF16 = jnp.bfloat16
F32 = jnp.float32
_VMEM_LIMIT = 48 * 1024 * 1024  # fits the v7x 64 MiB budget with headroom


def _round_up(x, m):
    return (x + m - 1) // m * m


def _prelu(x, a):
    return jnp.where(x > 0, x, a * x)


def _conv3_packed(h, w3, b, r, c):
    """k=3 'same' conv along fine time on phase-packed rows.

    h : (R, r*c) f32  -- row q, lane block s  == signal at fine time q*r + s
    w3: (3*c, c) bf16 -- [w_tap(-1); w_tap(0); w_tap(+1)] stacked along K (im2col)
    b : (1, c) f32
    returns (R, r*c) f32
    """
    zrow = jnp.zeros((1, c), h.dtype)
    # fine-time -1 neighbour of phase 0  == phase r-1 of the previous coarse row
    prev = jnp.concatenate([zrow, h[:-1, (r - 1) * c:]], axis=0)
    # fine-time +1 neighbour of phase r-1 == phase 0 of the next coarse row
    nxt = jnp.concatenate([h[1:, :c], zrow], axis=0)
    hext = jnp.concatenate([prev, h, nxt], axis=1)            # (R, (r+2)*c)
    outs = []
    for s in range(r):                                        # static unroll
        lhs = hext[:, s * c:(s + 3) * c].astype(BF16)         # taps (-1,0,+1) of phase s
        outs.append(jnp.dot(lhs, w3, preferred_element_type=F32) + b)
    if r == 1:
        return outs[0]
    return jnp.concatenate(outs, axis=1)


# ----------------------------------------------------------------------------
# Kernel 1: plain residual ConvBlock   out = x + Conv3(PReLU(Conv3(PReLU(x))))
# (only used on the coarsest, smallest tensor of the decoder)
# ----------------------------------------------------------------------------
def _plain_block_kernel(x_ref, a1_ref, w1_ref, b1_ref, a2_ref, w2_ref, b2_ref,
                        o_ref):
    c = a1_ref.shape[-1]
    x = x_ref[0].astype(F32)                                   # (T, C)
    h1 = _prelu(x, a1_ref[...])
    c1 = _conv3_packed(h1, w1_ref[...], b1_ref[...], 1, c)
    h2 = _prelu(c1, a2_ref[...])
    c2 = _conv3_packed(h2, w2_ref[...], b2_ref[...], 1, c)
    o_ref[0] = (x + c2).astype(o_ref.dtype)


def plain_block(x, p):
    B, T, C = x.shape
    return pl.pallas_call(
        _plain_block_kernel,
        out_shape=jax.ShapeDtypeStruct((B, T, C), BF16),
        grid=(B,),
        in_specs=[
            pl.BlockSpec((1, T, C), lambda b: (b, 0, 0)),
            pl.BlockSpec((1, C), lambda b: (0, 0)),
            pl.BlockSpec((3 * C, C), lambda b: (0, 0)),
            pl.BlockSpec((1, C), lambda b: (0, 0)),
            pl.BlockSpec((1, C), lambda b: (0, 0)),
            pl.BlockSpec((3 * C, C), lambda b: (0, 0)),
            pl.BlockSpec((1, C), lambda b: (0, 0)),
        ],
        out_specs=pl.BlockSpec((1, T, C), lambda b: (b, 0, 0)),
        compiler_params=pltpu.CompilerParams(
            dimension_semantics=("parallel",),
            vmem_limit_bytes=_VMEM_LIMIT),
    )(x, p["a1"], p["w1k"], p["b1"], p["a2"], p["w2k"], p["b2"])


# ----------------------------------------------------------------------------
# Kernel 2: fused 'up' stage
#   ConvTranspose1d(2C->C, k=2r, stride=r, pad=r//2) -> crop(length) ->
#   PReLU -> Conv3 -> PReLU -> Conv3 -> + residual
# Packed representation: row q / lane block s  == fine time q*r + s.
# ----------------------------------------------------------------------------
def _up_stage_kernel(x_ref, wl_ref, wr_ref, bu_ref,
                     a1_ref, w1_ref, b1_ref, a2_ref, w2_ref, b2_ref,
                     o_ref, *, r, cout, tt, length):
    t = pl.program_id(1)
    R = tt + 2                                      # coarse rows incl. +-1 halo
    start = pl.multiple_of(t * tt, 8)
    # x stays VMEM-resident across the T-tile axis; just window it (with halo).
    xw = x_ref[0, pl.ds(start, tt + 8), :]          # xw[u] = x[t*tt + u - 2] (zero padded)
    xa = xw[1:R + 1]                                # x[m],   m = t*tt - 1 + q
    xb = xw[0:R]                                    # x[m-1]
    xc = xw[2:R + 2]                                # x[m+1]

    # transposed conv (phase decomposition): 2 MXU matmuls, K = 2*C_in
    yl = jnp.dot(jnp.concatenate([xa, xb], axis=1), wl_ref[...],
                 preferred_element_type=F32)        # phases [0, r - r//2)
    yr = jnp.dot(jnp.concatenate([xc, xa], axis=1), wr_ref[...],
                 preferred_element_type=F32)        # phases [r - r//2, r)
    z0 = jnp.concatenate([yl, yr], axis=1) + bu_ref[...]      # (R, r*cout) f32

    # fold the crop `x[:, :length]` into the kernel as a fine-time validity mask
    base_j = (t * tt - 1) * r
    qi = lax.broadcasted_iota(jnp.int32, (R, r * cout), 0)
    li = lax.broadcasted_iota(jnp.int32, (R, r * cout), 1)
    j = base_j + qi * r + li // cout
    valid = (j >= 0) & (j < length)
    z0 = jnp.where(valid, z0, 0.0)

    # residual conv stack (polyphase form, im2col'd K = 3*C matmuls)
    a1p = jnp.concatenate([a1_ref[...]] * r, axis=1)
    a2p = jnp.concatenate([a2_ref[...]] * r, axis=1)
    h1 = _prelu(z0, a1p)
    c1 = _conv3_packed(h1, w1_ref[...], b1_ref[...], r, cout)
    c1 = jnp.where(valid, c1, 0.0)                  # crop boundary == zero padding for conv2
    h2 = _prelu(c1, a2p)
    c2 = _conv3_packed(h2, w2_ref[...], b2_ref[...], r, cout)

    out = z0 + c2
    o_ref[0] = out[1:tt + 1].astype(o_ref.dtype)    # drop the +-1 coarse-row halo


def up_stage(x, p, r, length, *, tile_rows=256):
    B, T_in, Cin = x.shape
    Cout = p["cout"]
    if length is None:
        length = T_in * r
    assert r >= 2 and length <= T_in * r
    p_rows = -(-length // r)                        # packed (coarse) output rows
    tt = min(_round_up(p_rows, 8), max(8, _round_up(tile_rows, 8)))
    n_t = -(-p_rows // tt)
    t_pad = n_t * tt + 8
    keep = min(T_in, n_t * tt + 2)
    # halo/zero padding of the (small) input done once in the wrapper
    xp = jnp.zeros((B, t_pad, Cin), BF16).at[:, 2:2 + keep].set(
        x[:, :keep].astype(BF16))

    nl = r - r // 2
    nr = r // 2
    out_packed = pl.pallas_call(
        functools.partial(_up_stage_kernel, r=r, cout=Cout, tt=tt, length=length),
        out_shape=jax.ShapeDtypeStruct((B, p_rows, r * Cout), BF16),
        grid=(B, n_t),
        in_specs=[
            pl.BlockSpec((1, t_pad, Cin), lambda b, t: (b, 0, 0)),   # resident per batch
            pl.BlockSpec((2 * Cin, nl * Cout), lambda b, t: (0, 0)),
            pl.BlockSpec((2 * Cin, nr * Cout), lambda b, t: (0, 0)),
            pl.BlockSpec((1, r * Cout), lambda b, t: (0, 0)),
            pl.BlockSpec((1, Cout), lambda b, t: (0, 0)),
            pl.BlockSpec((3 * Cout, Cout), lambda b, t: (0, 0)),
            pl.BlockSpec((1, Cout), lambda b, t: (0, 0)),
            pl.BlockSpec((1, Cout), lambda b, t: (0, 0)),
            pl.BlockSpec((3 * Cout, Cout), lambda b, t: (0, 0)),
            pl.BlockSpec((1, Cout), lambda b, t: (0, 0)),
        ],
        out_specs=pl.BlockSpec((1, tt, r * Cout), lambda b, t: (b, t, 0)),
        compiler_params=pltpu.CompilerParams(
            dimension_semantics=("parallel", "parallel"),
            vmem_limit_bytes=_VMEM_LIMIT),
    )(xp, p["wl"], p["wr"], p["bup"], p["a1"], p["w1k"], p["b1"],
      p["a2"], p["w2k"], p["b2"])

    out = out_packed.reshape(B, p_rows * r, Cout)   # free: identical HBM layout
    if p_rows * r != length:
        out = out[:, :length]
    return out


# ----------------------------------------------------------------------------
# Deterministic synthetic parameters (no checkpoint loading)
# ----------------------------------------------------------------------------
def init_conv_block_params(key, c):
    k = jax.random.split(key, 4)
    scale = 1.0 / math.sqrt(3.0 * c)
    p = dict(
        a1=jnp.full((1, c), 0.25, F32),
        b1=scale * jax.random.normal(k[1], (1, c), F32),
        a2=jnp.full((1, c), 0.25, F32),
        b2=scale * jax.random.normal(k[3], (1, c), F32),
        w1=(scale * jax.random.normal(k[0], (3, c, c), F32)).astype(BF16),
        w2=(scale * jax.random.normal(k[2], (3, c, c), F32)).astype(BF16),
    )
    p["w1k"] = p["w1"].reshape(3 * c, c)            # im2col weight layout
    p["w2k"] = p["w2"].reshape(3 * c, c)
    return p


def init_up_block_params(key, c, r):
    k = jax.random.split(key, 3)
    cin = 2 * c
    p = init_conv_block_params(k[2], c)
    scale = 1.0 / math.sqrt(2.0 * r * cin)
    w_up = (scale * jax.random.normal(k[0], (2 * r, cin, c), F32)).astype(BF16)
    b_up = scale * jax.random.normal(k[1], (1, c), F32)
    p["cout"] = c
    p["w_up"] = w_up                                # (K=2r, C_in, C_out), torch tap order
    p["b_up"] = b_up
    # per-phase packed weights for the 2-matmul phase decomposition
    half = r // 2
    nl = r - half
    p["wl"] = jnp.concatenate(
        [jnp.concatenate([w_up[s + half], w_up[s + half + r]], axis=0)
         for s in range(nl)], axis=1)               # (2*C_in, nl*C_out)
    p["wr"] = jnp.concatenate(
        [jnp.concatenate([w_up[s], w_up[s + r]], axis=0)
         for s in range(half)], axis=1)             # (2*C_in, nr*C_out)
    p["bup"] = jnp.concatenate([b_up] * r, axis=1)  # (1, r*C_out)
    return p


# ----------------------------------------------------------------------------
# ConditionerDecoder
# ----------------------------------------------------------------------------
class ConditionerDecoderPallas:
    def __init__(self, up_factors, input_channels, with_extra_conv_block=False,
                 key=None, tile_rows=256):
        self.up_factors = tuple(up_factors)
        self.extra_conv_block = with_extra_conv_block
        self.tile_rows = tile_rows
        L = len(up_factors)
        n_channels = [input_channels * 2 ** (L - i - 1) for i in range(L)]
        self.n_channels = n_channels
        key = jax.random.PRNGKey(0) if key is None else key
        keys = jax.random.split(key, L + 2)

        # input_conv_block = ConvBlock(2 * n_channels[0])  (plain, channel-preserving)
        self.input_params = init_conv_block_params(keys[0], 2 * n_channels[0])

        self.stages = []                            # ("plain", None, p) or ("up", r, p)
        if with_extra_conv_block:
            self.stages.append(
                ("plain", None, init_conv_block_params(keys[1], 2 * n_channels[0])))
        for i, (c, r) in enumerate(zip(n_channels, up_factors)):
            self.stages.append(("up", r, init_up_block_params(keys[i + 2], c, r)))

    def __call__(self, x, lengths):
        """x: (B, T, 2*n_channels[0]) channels-last.  Returns (x, conditions)."""
        x = x.astype(BF16)
        x = plain_block(x, self.input_params)       # x, *_ = input_conv_block(x)

        conditions = []
        for (kind, r, p), length in zip(self.stages, lengths):
            if kind == "up":
                # fused: rate change + crop-to-length + residual conv stack
                x = up_stage(x, p, r, length, tile_rows=self.tile_rows)
            else:
                x = plain_block(x, p)
                if length is not None:
                    x = x[:, :length]
            conditions.append(x)                    # TODO(synk): cond == block output (reconstructed)
        return x, conditions


# ----------------------------------------------------------------------------
# Pure-JAX (lax conv) reference, mirroring the kernel's bf16/f32 dtype chain.
# ----------------------------------------------------------------------------
def _ref_conv3(h_bf16, w_kio, b):
    y = lax.conv_general_dilated(
        h_bf16, w_kio, window_strides=(1,), padding=((1, 1),),
        dimension_numbers=("NHC", "HIO", "NHC"), preferred_element_type=F32)
    return y + b


def _ref_plain_block(x, p):
    xf = x.astype(F32)
    h1 = _prelu(xf, p["a1"]).astype(BF16)
    c1 = _ref_conv3(h1, p["w1"], p["b1"])
    h2 = _prelu(c1, p["a2"]).astype(BF16)
    c2 = _ref_conv3(h2, p["w2"], p["b2"])
    return (xf + c2).astype(BF16)


def _ref_up_stage(x, p, r, length):
    k = 2 * r
    pad = r // 2
    u = lax.conv_general_dilated(
        x, p["w_up"][::-1], window_strides=(1,),
        padding=((k - 1 - pad, k - 1 - pad),), lhs_dilation=(r,),
        dimension_numbers=("NHC", "HIO", "NHC"),
        preferred_element_type=F32) + p["b_up"]
    if length is None:
        length = u.shape[1]
    u = u[:, :length]
    h1 = _prelu(u, p["a1"]).astype(BF16)
    c1 = _ref_conv3(h1, p["w1"], p["b1"])
    h2 = _prelu(c1, p["a2"]).astype(BF16)
    c2 = _ref_conv3(h2, p["w2"], p["b2"])
    return (u + c2).astype(BF16)


def reference_forward(model, x, lengths):
    x = x.astype(BF16)
    x = _ref_plain_block(x, model.input_params)
    conditions = []
    for (kind, r, p), length in zip(model.stages, lengths):
        if kind == "up":
            x = _ref_up_stage(x, p, r, length)
        else:
            x = _ref_plain_block(x, p)
            if length is not None:
                x = x[:, :length]
        conditions.append(x)
    return x, conditions


# ----------------------------------------------------------------------------
if __name__ == "__main__":
    up_factors = (2, 2)
    input_channels = 4
    # n_channels = [8, 4]; decoder input has 2 * n_channels[0] = 16 channels
    B, T0, C0 = 2, 8, 16

    x = jax.random.normal(jax.random.PRNGKey(0), (B, T0, C0), F32)
    lengths = [15, 30]          # target lengths per up-module (exercises cropping)

    # tile_rows=8 keeps the toy problem multi-tile so the T-tiled / halo / partial
    # last-block path is exercised; production default is 256 input rows per tile.
    model = ConditionerDecoderPallas(up_factors, input_channels,
                                     with_extra_conv_block=False,
                                     key=jax.random.PRNGKey(42), tile_rows=8)

    out, conditions = model(x, lengths)
    out = jax.block_until_ready(out)
    conditions = [jax.block_until_ready(c) for c in conditions]

    assert out.shape == (B, lengths[-1], input_channels)
    assert conditions[0].shape == (B, lengths[0], 2 * input_channels)
    assert conditions[1].shape == (B, lengths[1], input_channels)

    # regression check against a pure-JAX (lax conv) reference with the same
    # bf16 storage / f32 accumulation chain
    ref_out, ref_conditions = reference_forward(model, x, lengths)
    np.testing.assert_allclose(np.asarray(out.astype(F32)),
                               np.asarray(ref_out.astype(F32)),
                               rtol=0.1, atol=0.1)
    for c, rc in zip(conditions, ref_conditions):
        np.testing.assert_allclose(np.asarray(c.astype(F32)),
                                   np.asarray(rc.astype(F32)),
                                   rtol=0.1, atol=0.1)
    print("KERNEL_OK")
</pallas_src>

<mosaic_0001>
module attributes {stable_mosaic.version = 11 : i64} {
  func.func @_plain_block_kernel(%arg0: i32, %arg1: memref<1x8x16xbf16, #tpu.memory_space<vmem>>, %arg2: memref<1x16xf32, #tpu.memory_space<vmem>>, %arg3: memref<48x16xbf16, #tpu.memory_space<vmem>>, %arg4: memref<1x16xf32, #tpu.memory_space<vmem>>, %arg5: memref<1x16xf32, #tpu.memory_space<vmem>>, %arg6: memref<48x16xbf16, #tpu.memory_space<vmem>>, %arg7: memref<1x16xf32, #tpu.memory_space<vmem>>, %arg8: memref<1x8x16xbf16, #tpu.memory_space<vmem>>) attributes {dimension_semantics = [#tpu.dimension_semantics<parallel>], iteration_bounds = array<i64: 2>, scalar_prefetch = 0 : i64, scratch_operands = 0 : i64, tpu.core_type = #tpu.core_type<tc>, window_params = [{transform_indices = @transform_0, window_bounds = array<i64: 1, 8, 16>}, {pipeline_mode = #tpu.pipeline_mode<synchronous>, transform_indices = @transform_1, window_bounds = array<i64: 1, 16>}, {pipeline_mode = #tpu.pipeline_mode<synchronous>, transform_indices = @transform_2, window_bounds = array<i64: 48, 16>}, {pipeline_mode = #tpu.pipeline_mode<synchronous>, transform_indices = @transform_3, window_bounds = array<i64: 1, 16>}, {pipeline_mode = #tpu.pipeline_mode<synchronous>, transform_indices = @transform_4, window_bounds = array<i64: 1, 16>}, {pipeline_mode = #tpu.pipeline_mode<synchronous>, transform_indices = @transform_5, window_bounds = array<i64: 48, 16>}, {pipeline_mode = #tpu.pipeline_mode<synchronous>, transform_indices = @transform_6, window_bounds = array<i64: 1, 16>}, {transform_indices = @transform_7, window_bounds = array<i64: 1, 8, 16>}]} {
    %c0 = arith.constant 0 : index
    %c0_0 = arith.constant 0 : index
    %c0_1 = arith.constant 0 : index
    %0 = vector.load %arg1[%c0, %c0_0, %c0_1] : memref<1x8x16xbf16, #tpu.memory_space<vmem>>, vector<1x8x16xbf16>
    %1 = vector.shape_cast %0 : vector<1x8x16xbf16> to vector<8x16xbf16>
    %2 = arith.extf %1 : vector<8x16xbf16> to vector<8x16xf32>
    %c0_2 = arith.constant 0 : index
    %c0_3 = arith.constant 0 : index
    %3 = vector.load %arg2[%c0_2, %c0_3] : memref<1x16xf32, #tpu.memory_space<vmem>>, vector<1x16xf32>
    %cst = arith.constant 0.000000e+00 : f32
    %4 = vector.broadcast %cst : f32 to vector<8x16xf32>
    %5 = arith.cmpf ogt, %2, %4 : vector<8x16xf32>
    %6 = vector.broadcast %3 : vector<1x16xf32> to vector<8x16xf32>
    %7 = arith.mulf %6, %2 : vector<8x16xf32>
    %8 = arith.select %5, %2, %7 : vector<8x16xi1>, vector<8x16xf32>
    %c0_4 = arith.constant 0 : index
    %c0_5 = arith.constant 0 : index
    %9 = vector.load %arg3[%c0_4, %c0_5] : memref<48x16xbf16, #tpu.memory_space<vmem>>, vector<48x16xbf16>
    %c0_6 = arith.constant 0 : index
    %c0_7 = arith.constant 0 : index
    %10 = vector.load %arg4[%c0_6, %c0_7] : memref<1x16xf32, #tpu.memory_space<vmem>>, vector<1x16xf32>
    %cst_8 = arith.constant 0.000000e+00 : f32
    %11 = vector.broadcast %cst_8 : f32 to vector<1x16xf32>
    %12 = vector.extract_strided_slice %8 {offsets = [0, 0], sizes = [7, 16], strides = [1, 1]} : vector<8x16xf32> to vector<7x16xf32>
    %13 = tpu.concatenate %11, %12 in 0 : vector<1x16xf32>, vector<7x16xf32> -> vector<8x16xf32>
    %14 = vector.extract_strided_slice %8 {offsets = [1, 0], sizes = [7, 16], strides = [1, 1]} : vector<8x16xf32> to vector<7x16xf32>
    %15 = tpu.concatenate %14, %11 in 0 : vector<7x16xf32>, vector<1x16xf32> -> vector<8x16xf32>
    %16 = tpu.concatenate %13, %8, %15 in 1 : vector<8x16xf32>, vector<8x16xf32>, vector<8x16xf32> -> vector<8x48xf32>
    %17 = arith.truncf %16 : vector<8x48xf32> to vector<8x48xbf16>
    %cst_9 = arith.constant dense<0.000000e+00> : vector<8x16xf32>
    %18 = tpu.matmul %17, %9, %cst_9 {dimension_numbers = #tpu.dot_dimension_numbers<[1], [0], [0], [1], [0, 0, 1, 1], [], []>} : vector<8x48xbf16>, vector<48x16xbf16>, vector<8x16xf32> -> vector<8x16xf32>
    %19 = vector.broadcast %10 : vector<1x16xf32> to vector<8x16xf32>
    %20 = arith.addf %18, %19 : vector<8x16xf32>
    %c0_10 = arith.constant 0 : index
    %c0_11 = arith.constant 0 : index
    %21 = vector.load %arg5[%c0_10, %c0_11] : memref<1x16xf32, #tpu.memory_space<vmem>>, vector<1x16xf32>
    %cst_12 = arith.constant 0.000000e+00 : f32
    %22 = vector.broadcast %cst_12 : f32 to vector<8x16xf32>
    %23 = arith.cmpf ogt, %20, %22 : vector<8x16xf32>
    %24 = vector.broadcast %21 : vector<1x16xf32> to vector<8x16xf32>
    %25 = arith.mulf %24, %20 : vector<8x16xf32>
    %26 = arith.select %23, %20, %25 : vector<8x16xi1>, vector<8x16xf32>
    %c0_13 = arith.constant 0 : index
    %c0_14 = arith.constant 0 : index
    %27 = vector.load %arg6[%c0_13, %c0_14] : memref<48x16xbf16, #tpu.memory_space<vmem>>, vector<48x16xbf16>
    %c0_15 = arith.constant 0 : index
    %c0_16 = arith.constant 0 : index
    %28 = vector.load %arg7[%c0_15, %c0_16] : memref<1x16xf32, #tpu.memory_space<vmem>>, vector<1x16xf32>
    %cst_17 = arith.constant 0.000000e+00 : f32
    %29 = vector.broadcast %cst_17 : f32 to vector<1x16xf32>
    %30 = vector.extract_strided_slice %26 {offsets = [0, 0], sizes = [7, 16], strides = [1, 1]} : vector<8x16xf32> to vector<7x16xf32>
    %31 = tpu.concatenate %29, %30 in 0 : vector<1x16xf32>, vector<7x16xf32> -> vector<8x16xf32>
    %32 = vector.extract_strided_slice %26 {offsets = [1, 0], sizes = [7, 16], strides = [1, 1]} : vector<8x16xf32> to vector<7x16xf32>
    %33 = tpu.concatenate %32, %29 in 0 : vector<7x16xf32>, vector<1x16xf32> -> vector<8x16xf32>
    %34 = tpu.concatenate %31, %26, %33 in 1 : vector<8x16xf32>, vector<8x16xf32>, vector<8x16xf32> -> vector<8x48xf32>
    %35 = arith.truncf %34 : vector<8x48xf32> to vector<8x48xbf16>
    %cst_18 = arith.constant dense<0.000000e+00> : vector<8x16xf32>
    %36 = tpu.matmul %35, %27, %cst_18 {dimension_numbers = #tpu.dot_dimension_numbers<[1], [0], [0], [1], [0, 0, 1, 1], [], []>} : vector<8x48xbf16>, vector<48x16xbf16>, vector<8x16xf32> -> vector<8x16xf32>
    %37 = vector.broadcast %28 : vector<1x16xf32> to vector<8x16xf32>
    %38 = arith.addf %36, %37 : vector<8x16xf32>
    %39 = arith.addf %2, %38 : vector<8x16xf32>
    %40 = arith.truncf %39 : vector<8x16xf32> to vector<8x16xbf16>
    %c0_19 = arith.constant 0 : index
    %c0_20 = arith.constant 0 : index
    %c0_21 = arith.constant 0 : index
    %41 = vector.load %arg8[%c0_19, %c0_20, %c0_21] : memref<1x8x16xbf16, #tpu.memory_space<vmem>>, vector<1x8x16xbf16>
    %42 = vector.shape_cast %41 : vector<1x8x16xbf16> to vector<8x16xbf16>
    %43 = vector.shape_cast %40 : vector<8x16xbf16> to vector<1x8x16xbf16>
    tpu.vector_store %arg8[%c0_19, %c0_20, %c0_21], %43 {strides = array<i32>} : memref<1x8x16xbf16, #tpu.memory_space<vmem>>, vector<1x8x16xbf16>,
    return
  }
  func.func @transform_0(%arg0: i32) -> (i32, i32, i32) {
    %c0_i32 = arith.constant 0 : i32
    %c0_i32_0 = arith.constant 0 : i32
    %c0_i32_1 = arith.constant 0 : i32
    return %arg0, %c0_i32, %c0_i32_0 : i32, i32, i32
  }
  func.func @transform_1(%arg0: i32) -> (i32, i32) {
    %c0_i32 = arith.constant 0 : i32
    %c0_i32_0 = arith.constant 0 : i32
    %c0_i32_1 = arith.constant 0 : i32
    return %c0_i32, %c0_i32_0 : i32, i32
  }
  func.func @transform_2(%arg0: i32) -> (i32, i32) {
    %c0_i32 = arith.constant 0 : i32
    %c0_i32_0 = arith.constant 0 : i32
    %c0_i32_1 = arith.constant 0 : i32
    return %c0_i32, %c0_i32_0 : i32, i32
  }
  func.func @transform_3(%arg0: i32) -> (i32, i32) {
    %c0_i32 = arith.constant 0 : i32
    %c0_i32_0 = arith.constant 0 : i32
    %c0_i32_1 = arith.constant 0 : i32
    return %c0_i32, %c0_i32_0 : i32, i32
  }
  func.func @transform_4(%arg0: i32) -> (i32, i32) {
    %c0_i32 = arith.constant 0 : i32
    %c0_i32_0 = arith.constant 0 : i32
    %c0_i32_1 = arith.constant 0 : i32
    return %c0_i32, %c0_i32_0 : i32, i32
  }
  func.func @transform_5(%arg0: i32) -> (i32, i32) {
    %c0_i32 = arith.constant 0 : i32
    %c0_i32_0 = arith.constant 0 : i32
    %c0_i32_1 = arith.constant 0 : i32
    return %c0_i32, %c0_i32_0 : i32, i32
  }
  func.func @transform_6(%arg0: i32) -> (i32, i32) {
    %c0_i32 = arith.constant 0 : i32
    %c0_i32_0 = arith.constant 0 : i32
    %c0_i32_1 = arith.constant 0 : i32
    return %c0_i32, %c0_i32_0 : i32, i32
  }
  func.func @transform_7(%arg0: i32) -> (i32, i32, i32) {
    %c0_i32 = arith.constant 0 : i32
    %c0_i32_0 = arith.constant 0 : i32
    %c0_i32_1 = arith.constant 0 : i32
    return %arg0, %c0_i32, %c0_i32_0 : i32, i32, i32
  }
}

</mosaic_0001>

<llo_original>
// kernel: tpu_custom_call.1
$region0: #{tpu_custom_call.1}
  #allocation0 [shape = 'u32[]', space=smem, size = 0x4, offset = 0x4, fixed_abs, tag = 'smem constant byte address 0x4 - core index']
  #allocation1 [shape = 'u32[144,128]{1,0:T(1,128)}', space=vmem, size = 0x12000, scoped, tag = 'internal scratch']
  %s0 = inlined_call_operand.vmem [shape: bf16[2,8,16], index: 0, kind: input, shape index: {}]
  %s1 = inlined_call_operand.vmem [shape: f32[1,16], index: 1, kind: input, shape index: {}]
  %s2 = inlined_call_operand.vmem [shape: bf16[48,16], index: 2, kind: input, shape index: {}]
  %s3 = inlined_call_operand.vmem [shape: f32[1,16], index: 3, kind: input, shape index: {}]
  %s4 = inlined_call_operand.vmem [shape: f32[1,16], index: 4, kind: input, shape index: {}]
  %s5 = inlined_call_operand.vmem [shape: bf16[48,16], index: 5, kind: input, shape index: {}]
  %s6 = inlined_call_operand.vmem [shape: f32[1,16], index: 6, kind: input, shape index: {}]
  %s7 = inlined_call_operand.hbm [shape: bf16[2,8,16], index: 7, kind: output, shape index: {}]
  %s8 = sld [smem:[#allocation0]]
  $region61: #{tpu_custom_call.1} parent=0
    _
  %s10 = ssub.s32 1, %s8
  %s11 = scalar_select 0, %s10, %s8
  $region1: #{tpu_custom_call.1} parent=0
    #allocation2 [shape = 'u8[4096]{0}', space=vmem, size = 0x1000, scoped, tag = 'output window, operand 0']
    #allocation3 [shape = 's32[2]{0}', space=sflag, size = 0x8, scoped, tag = 'scoped memory for tpu_custom_call.1']
    %12 = vsyncpa [#allocation3], 0
    %s13 = scalar_lea.sflag [#allocation3], 1
    %14 = vsyncpa %s13, 0
    loop: start=0, step=1, limit=4
    $region2: #{tpu_custom_call.1} parent=1 // loop_pre_header
      _
    $region3: #{tpu_custom_call.1} parent=1 // loop_header
      %s16 = sphi 0, %s20
      %p17 = scmp.ge.s32.totalorder %s16, 4
      %s26 = sphi 0, %s28
      %s29 = sphi 0, %s26
      %s30 = sphi 0, %s29
      %s46 = sphi 0, %s30
      %s50 = sphi 0, %s50
      %s52 = sphi 0, %s50
      %s53 = sphi 0, %s52
      %s67 = sphi 0, %s53
      %s71 = sphi 0, %s71
      %s73 = sphi 0, %s71
      %s74 = sphi 0, %s73
      %s88 = sphi 0, %s74
      %s92 = sphi 0, %s92
      %s94 = sphi 0, %s92
      %s95 = sphi 0, %s94
      %s109 = sphi 0, %s95
      %s113 = sphi 0, %s113
      %s115 = sphi 0, %s113
      %s116 = sphi 0, %s115
      %s130 = sphi 0, %s116
      %s134 = sphi 0, %s134
      %s136 = sphi 0, %s134
      %s137 = sphi 0, %s136
      %s151 = sphi 0, %s137
      %s155 = sphi 0, %s155
      %s157 = sphi 0, %s155
      %s158 = sphi 0, %s157
      %s172 = sphi 0, %s158
      %s178 = sphi 0, %s180
      %s181 = sphi 0, %s178
      %s182 = sphi 0, %s181
      %s198 = sphi 0, %s182
    $region4: #{tpu_custom_call.1} parent=1 // loop_header_branch
      %19 = sbr.rel (%p17) target = $region8
    $region5: #{tpu_custom_call.1} parent=1 // loop_body
      %s21 = ssub.s32 %s16, 1
      %s22 = ssub.s32 %s16, 2
      %s23 = sadd.s32 %s16, 1
      %s24 = ssub.s32 %s16, %s23
      %p25 = scmp.eq.s32.totalorder %s24, 0
      %s27 = sadd.s32 %s26, 1
      %s28 = scalar_select %p25, %s26, %s27
      %p31 = pneg %p25
      %p32 = scmp.eq.s32.totalorder %s16, 1
      %p33 = por %p31, %p32
      %p34 = scmp.ne.s32.totalorder %s26, %s29
      %p35 = scmp.eq.s32.totalorder %s16, 0
      %p36 = por %p34, %p35
      %p37 = scmp.ne.s32.totalorder %s26, %s29
      %p38 = scmp.eq.s32.totalorder %s21, 1
      %p39 = por %p37, %p38
      %p40 = scmp.ne.s32.totalorder %s29, %s30
      %p41 = scmp.eq.s32.totalorder %s21, 0
      %p42 = por %p40, %p41
      %p43 = scmp.ne.s32.totalorder %s29, %s30
      %p44 = scmp.eq.s32.totalorder %s22, 1
      %p45 = por %p43, %p44
      %p47 = scmp.ne.s32.totalorder %s30, %s46
      %p48 = scmp.eq.s32.totalorder %s22, 0
      %p49 = por %p47, %p48
      %s51 = sadd.s32 %s50, 1
      %p54 = scmp.eq.s32.totalorder %s16, 1
      %p55 = scmp.ne.s32.totalorder %s50, %s52
      %p56 = scmp.eq.s32.totalorder %s16, 0
      %p57 = por %p55, %p56
      %p58 = scmp.ne.s32.totalorder %s50, %s52
      %p59 = scmp.eq.s32.totalorder %s21, 1
      %p60 = por %p58, %p59
      %p61 = scmp.ne.s32.totalorder %s52, %s53
      %p62 = scmp.eq.s32.totalorder %s21, 0
      %p63 = por %p61, %p62
      %p64 = scmp.ne.s32.totalorder %s52, %s53
      %p65 = scmp.eq.s32.totalorder %s22, 1
      %p66 = por %p64, %p65
      %p68 = scmp.ne.s32.totalorder %s53, %s67
      %p69 = scmp.eq.s32.totalorder %s22, 0
      %p70 = por %p68, %p69
      %s72 = sadd.s32 %s71, 1
      %p75 = scmp.eq.s32.totalorder %s16, 1
      %p76 = scmp.ne.s32.totalorder %s71, %s73
      %p77 = scmp.eq.s32.totalorder %s16, 0
      %p78 = por %p76, %p77
      %p79 = scmp.ne.s32.totalorder %s71, %s73
      %p80 = scmp.eq.s32.totalorder %s21, 1
      %p81 = por %p79, %p80
      %p82 = scmp.ne.s32.totalorder %s73, %s74
      %p83 = scmp.eq.s32.totalorder %s21, 0
      %p84 = por %p82, %p83
      %p85 = scmp.ne.s32.totalorder %s73, %s74
      %p86 = scmp.eq.s32.totalorder %s22, 1
      %p87 = por %p85, %p86
      %p89 = scmp.ne.s32.totalorder %s74, %s88
      %p90 = scmp.eq.s32.totalorder %s22, 0
      %p91 = por %p89, %p90
      %s93 = sadd.s32 %s92, 1
      %p96 = scmp.eq.s32.totalorder %s16, 1
      %p97 = scmp.ne.s32.totalorder %s92, %s94
      %p98 = scmp.eq.s32.totalorder %s16, 0
      %p99 = por %p97, %p98
      %p100 = scmp.ne.s32.totalorder %s92, %s94
      %p101 = scmp.eq.s32.totalorder %s21, 1
      %p102 = por %p100, %p101
      %p103 = scmp.ne.s32.totalorder %s94, %s95
      %p104 = scmp.eq.s32.totalorder %s21, 0
      %p105 = por %p103, %p104
      %p106 = scmp.ne.s32.totalorder %s94, %s95
      %p107 = scmp.eq.s32.totalorder %s22, 1
      %p108 = por %p106, %p107
      %p110 = scmp.ne.s32.totalorder %s95, %s109
      %p111 = scmp.eq.s32.totalorder %s22, 0
      %p112 = por %p110, %p111
      %s114 = sadd.s32 %s113, 1
      %p117 = scmp.eq.s32.totalorder %s16, 1
      %p118 = scmp.ne.s32.totalorder %s113, %s115
      %p119 = scmp.eq.s32.totalorder %s16, 0
      %p120 = por %p118, %p119
      %p121 = scmp.ne.s32.totalorder %s113, %s115
      %p122 = scmp.eq.s32.totalorder %s21, 1
      %p123 = por %p121, %p122
      %p124 = scmp.ne.s32.totalorder %s115, %s116
      %p125 = scmp.eq.s32.totalorder %s21, 0
      %p126 = por %p124, %p125
      %p127 = scmp.ne.s32.totalorder %s115, %s116
      %p128 = scmp.eq.s32.totalorder %s22, 1
      %p129 = por %p127, %p128
      %p131 = scmp.ne.s32.totalorder %s116, %s130
      %p132 = scmp.eq.s32.totalorder %s22, 0
      %p133 = por %p131, %p132
      %s135 = sadd.s32 %s134, 1
      %p138 = scmp.eq.s32.totalorder %s16, 1
      %p139 = scmp.ne.s32.totalorder %s134, %s136
      %p140 = scmp.eq.s32.totalorder %s16, 0
      %p141 = por %p139, %p140
      %p142 = scmp.ne.s32.totalorder %s134, %s136
      %p143 = scmp.eq.s32.totalorder %s21, 1
      %p144 = por %p142, %p143
      %p145 = scmp.ne.s32.totalorder %s136, %s137
      %p146 = scmp.eq.s32.totalorder %s21, 0
      %p147 = por %p145, %p146
      %p148 = scmp.ne.s32.totalorder %s136, %s137
      %p149 = scmp.eq.s32.totalorder %s22, 1
      %p150 = por %p148, %p149
      %p152 = scmp.ne.s32.totalorder %s137, %s151
      %p153 = scmp.eq.s32.totalorder %s22, 0
      %p154 = por %p152, %p153
      %s156 = sadd.s32 %s155, 1
      %p159 = scmp.eq.s32.totalorder %s16, 1
      %p160 = scmp.ne.s32.totalorder %s155, %s157
      %p161 = scmp.eq.s32.totalorder %s16, 0
      %p162 = por %p160, %p161
      %p163 = scmp.ne.s32.totalorder %s155, %s157
      %p164 = scmp.eq.s32.totalorder %s21, 1
      %p165 = por %p163, %p164
      %p166 = scmp.ne.s32.totalorder %s157, %s158
      %p167 = scmp.eq.s32.totalorder %s21, 0
      %p168 = por %p166, %p167
      %p169 = scmp.ne.s32.totalorder %s157, %s158
      %p170 = scmp.eq.s32.totalorder %s22, 1
      %p171 = por %p169, %p170
      %p173 = scmp.ne.s32.totalorder %s158, %s172
      %p174 = scmp.eq.s32.totalorder %s22, 0
      %p175 = por %p173, %p174
      %s176 = ssub.s32 %s16, %s23
      %p177 = scmp.eq.s32.totalorder %s176, 0
      %s179 = sadd.s32 %s178, 1
      %s180 = scalar_select %p177, %s178, %s179
      %p183 = pneg %p177
      %p184 = scmp.eq.s32.totalorder %s16, 1
      %p185 = por %p183, %p184
      %p186 = scmp.ne.s32.totalorder %s178, %s181
      %p187 = scmp.eq.s32.totalorder %s16, 0
      %p188 = por %p186, %p187
      %p189 = scmp.ne.s32.totalorder %s178, %s181
      %p190 = scmp.eq.s32.totalorder %s21, 1
      %p191 = por %p189, %p190
      %p192 = scmp.ne.s32.totalorder %s181, %s182
      %p193 = scmp.eq.s32.totalorder %s21, 0
      %p194 = por %p192, %p193
      %p195 = scmp.ne.s32.totalorder %s181, %s182
      %p196 = scmp.eq.s32.totalorder %s22, 1
      %p197 = por %p195, %p196
      %p199 = scmp.ne.s32.totalorder %s182, %s198
      %p200 = scmp.eq.s32.totalorder %s22, 0
      %p201 = por %p199, %p200
      %p202 = scmp.le.s32.totalorder 1, %s16
      %p203 = scmp.lt.s32.totalorder %s16, 3
      %p204 = pnand %p202, %p203
      %p205 = pneg %p204
      // Predicated region
      $region9: #{tpu_custom_call.1} parent=5 // pred_check
        _
      $region10: #{tpu_custom_call.1} parent=5 // pred_check_branch
        %207 = sbr.rel (%p204) target = $region12
      $region11: #{tpu_custom_call.1} parent=5 // pred_region
        %s208 = ssub.s32 %s16, 1
        // Predicated region
        $region13: #{tpu_custom_call.1} parent=11 // pred_check
          %p209 = pneg %p63
        $region14: #{tpu_custom_call.1} parent=11 // pred_check_branch
          %211 = sbr.rel (%p209) target = $region16
        $region15: #{tpu_custom_call.1} parent=11 // pred_region
          _
        $region16: #{tpu_custom_call.1} parent=11 // pred_fallthru
          _
        // Predicated region
        $region17: #{tpu_custom_call.1} parent=11 // pred_check
          %p212 = pneg %p84
        $region18: #{tpu_custom_call.1} parent=11 // pred_check_branch
          %214 = sbr.rel (%p212) target = $region20
        $region19: #{tpu_custom_call.1} parent=11 // pred_region
          _
        $region20: #{tpu_custom_call.1} parent=11 // pred_fallthru
          _
        // Predicated region
        $region21: #{tpu_custom_call.1} parent=11 // pred_check
          %p215 = pneg %p105
        $region22: #{tpu_custom_call.1} parent=11 // pred_check_branch
          %217 = sbr.rel (%p215) target = $region24
        $region23: #{tpu_custom_call.1} parent=11 // pred_region
          _
        $region24: #{tpu_custom_call.1} parent=11 // pred_fallthru
          _
        // Predicated region
        $region25: #{tpu_custom_call.1} parent=11 // pred_check
          %p218 = pneg %p126
        $region26: #{tpu_custom_call.1} parent=11 // pred_check_branch
          %220 = sbr.rel (%p218) target = $region28
        $region27: #{tpu_custom_call.1} parent=11 // pred_region
          _
        $region28: #{tpu_custom_call.1} parent=11 // pred_fallthru
          _
        // Predicated region
        $region29: #{tpu_custom_call.1} parent=11 // pred_check
          %p221 = pneg %p147
        $region30: #{tpu_custom_call.1} parent=11 // pred_check_branch
          %223 = sbr.rel (%p221) target = $region32
        $region31: #{tpu_custom_call.1} parent=11 // pred_region
          _
        $region32: #{tpu_custom_call.1} parent=11 // pred_fallthru
          _
        // Predicated region
        $region33: #{tpu_custom_call.1} parent=11 // pred_check
          %p224 = pneg %p168
        $region34: #{tpu_custom_call.1} parent=11 // pred_check_branch
          %226 = sbr.rel (%p224) target = $region36
        $region35: #{tpu_custom_call.1} parent=11 // pred_region
          _
        $region36: #{tpu_custom_call.1} parent=11 // pred_fallthru
          _
      $region12: #{tpu_custom_call.1} parent=5 // pred_fallthru
        _
      %p227 = scmp.lt.s32.totalorder %s16, 2
      // Predicated region
      $region37: #{tpu_custom_call.1} parent=5 // pred_check
        %p228 = pneg %p227
      $region38: #{tpu_custom_call.1} parent=5 // pred_check_branch
        %230 = sbr.rel (%p228) target = $region40
      $region39: #{tpu_custom_call.1} parent=5 // pred_region
        // Predicated region
        $region41: #{tpu_custom_call.1} parent=39 // pred_check
          %p231 = pneg %p36
        $region42: #{tpu_custom_call.1} parent=39 // pred_check_branch
          %233 = sbr.rel (%p231) target = $region44
        $region43: #{tpu_custom_call.1} parent=39 // pred_region
          %p234 = scmp.lt.s32.totalorder %s16, 1
          %s235 = scalar_select %p234, %s16, 1
          %s236 = smul.addr %s235, 4
          %s237 = scalar_lea.vmem %s0, %s236
        $region44: #{tpu_custom_call.1} parent=39 // pred_fallthru
          _
      $region40: #{tpu_custom_call.1} parent=5 // pred_fallthru
        _
      %p238 = scmp.le.s32.totalorder 1, %s16
      %p239 = scmp.lt.s32.totalorder %s16, 3
      %p240 = pnand %p238, %p239
      %p241 = pneg %p240
      // Predicated region
      $region45: #{tpu_custom_call.1} parent=5 // pred_check
        _
      $region46: #{tpu_custom_call.1} parent=5 // pred_check_branch
        %243 = sbr.rel (%p240) target = $region48
      $region47: #{tpu_custom_call.1} parent=5 // pred_region
        %s244 = ssub.s32 %s16, 1
        %p245 = scmp.lt.s32.totalorder %s21, 1
        %s246 = scalar_select %p245, %s21, 1
        %s247 = smul.addr %s246, 4
        %s248 = scalar_lea.vmem %s0, %s247
        %p249 = pneg %p42
        %p250 = pneg %p39
        %p251 = pneg %p63
        %p252 = pneg %p60
        %p253 = pneg %p84
        %p254 = pneg %p81
        %p255 = pneg %p105
        %p256 = pneg %p102
        %p257 = pneg %p126
        %p258 = pneg %p123
        %p259 = pneg %p147
        %p260 = pneg %p144
        %p261 = pneg %p168
        %p262 = pneg %p165
        %p263 = pneg %p194
        %p264 = pneg %p191
        %s265 = sand.u32 %s181, 1
        %s266 = scalar_lea.sflag [#allocation3], %s265
        %s267 = sand.u32 %s181, 1
        %s268 = smul.addr %s267, 4
        %s269 = scalar_lea.vmem [#allocation2], %s268
        %p270 = scmp.lt.s32.totalorder %s21, 1
        %s271 = scalar_select %p270, %s21, 1
        %s272 = smul.addr %s271, 4
        %s273 = scalar_lea.vmem %s0, %s272
        %v275 = vld [vmem:[%s273] sm:$0xf]
        %v276 = vunpack.c.l.bf16 %v275
        %v277 = vld [vmem:[%s1] sm:$0x1]
        %vm278 = vcmp.gt.f32.partialorder %v276, 0.0
        %v280 = vlaneseq
        %v281 = vshrl.u32 %v280, 7
        %v282 = vsub.s32 0, %v281
        %v283 = vrot.slane %v277, %v282
        %v285 = vmul.f32 %v283, %v276
        %v286 = vsel %vm278, %v276, %v285
        %v287 = vld [vmem:[%s2] sm:$0xf]
        %v288 = vld [vmem:[%s2 + $0x4] sm:$0xf]
        %v289 = vld [vmem:[%s2 + $0x8] sm:$0xf]
        %v290 = vld [vmem:[%s2 + $0xc] sm:$0xf]
        %v291 = vld [vmem:[%s2 + $0x10] sm:$0xf]
        %v292 = vld [vmem:[%s2 + $0x14] sm:$0xf]
        %v293 = vld [vmem:[%s3] sm:$0x1]
        %v295 = vrot.slane %v286, 7
        %vm297 = vcmask 1040384
        %v298 = vsel %vm297, 0.0, %v295
        %v299 = vrot.slane %v286, 1
        %vm301 = vcmask 1046528
        %v302 = vsel %vm301, %v299, 0.0
        %303 = vrot.lane.b32.xlu0 %v286, 16
        %v304 = vpop.permute.xlu0 %303
        %307 = vrot.lane.b32.xlu0 %v302, 32
        %v308 = vpop.permute.xlu0 %307
        %vm310 = vcmask 130048
        %v311 = vsel %vm310, %v298, %v304
        %vm312 = vcmask 261120
        %v313 = vsel %vm312, %v311, %v308
        %v314 = vpack.c.bf16 %v313, %v313
        %v316 = vlaneseq
        %v317 = vshrl.u32 %v316, 7
        %v318 = vsub.s32 0, %v317
        %v319 = vrot.slane %v293, %v318
        %v327 = vunpack.c.l.b16 %v287
        %v328 = vunpack.c.l.b16 %v288
        %v329 = vunpack.c.l.b16 %v289
        %v330 = vunpack.c.l.b16 %v290
        %v331 = vunpack.c.l.b16 %v291
        %v332 = vunpack.c.l.b16 %v292
        %v333 = vpack.c.b16 %v328, %v327
        %v334 = vpack.c.b16 %v330, %v329
        %v335 = vpack.c.b16 %v332, %v331
        %vm339 = vcmask 392192
        %v341 = vsel %vm339, %v314, 0
        %343 = vmatprep.subr.bf16.mxu0 0
        %344 = vmatpush1.bf16.msra.mxu0 %v333
        %345 = vmatprep.subr.bf16.mxu0 0
        %346 = vmatpush1.bf16.msra.mxu0 %v334
        %347 = vmatprep.subr.bf16.mxu0 0
        %348 = vmatpush1.bf16.msra.mxu0 %v335
        %349 = vmatprep.subr.bf16.mxu0 0
        %350 = vmatpush1.bf16.msra.mxu0 0
        %351 = vmatprep.subr.bf16.mxu0 0
        %352 = vmatpush1.bf16.msra.mxu0 0
        %353 = vmatprep.subr.bf16.mxu0 0
        %354 = vmatpush1.bf16.msra.mxu0 0
        %355 = vmatprep.subr.bf16.mxu0 0
        %356 = vmatpush1.bf16.msra.mxu0 0
        %357 = vmatprep.subr.bf16.mxu0 0
        %358 = vmatpush1.bf16.msra.mxu0 0
        %359 = vmatprep.subr.bf16.mxu0 0
        %360 = vmatpush1.bf16.msra.mxu0 0
        %361 = vmatprep.subr.bf16.mxu0 0
        %362 = vmatpush1.bf16.msra.mxu0 0
        %363 = vmatprep.subr.bf16.mxu0 0
        %364 = vmatpush1.bf16.msra.mxu0 0
        %365 = vmatprep.subr.bf16.mxu0 0
        %366 = vmatpush1.bf16.msra.mxu0 0
        %367 = vmatprep.subr.bf16.mxu0 0
        %368 = vmatpush1.bf16.msra.mxu0 0
        %369 = vmatprep.subr.bf16.mxu0 0
        %370 = vmatpush1.bf16.msra.mxu0 0
        %371 = vmatprep.subr.bf16.mxu0 0
        %372 = vmatpush1.bf16.msra.mxu0 0
        %373 = vmatprep.subr.bf16.mxu0 0
        %374 = vmatpush1.bf16.msra.mxu0 0
        %375 = vmatprep.mubr.bf16.mxu0 0
        %376 = vmatmul.mubr.bf16.gmra.mrb[0].mxu0 %v341
        %v377 = vpop.f32.mrb[0].mxu0
        %v378 = vadd.f32 %v319, %v377
        %v379 = vpop.f32.mrb[0].mxu0
        %v380 = vpop.f32.mrb[0].mxu0
        %v381 = vpop.f32.mrb[0].mxu0
        %382 = vdwg.mxu0
        %v383 = vld [vmem:[%s4] sm:$0x1]
        %vm384 = vcmp.gt.f32.partialorder %v378, 0.0
        %v386 = vlaneseq
        %v387 = vshrl.u32 %v386, 7
        %v388 = vsub.s32 0, %v387
        %v389 = vrot.slane %v383, %v388
        %v391 = vmul.f32 %v389, %v378
        %v392 = vsel %vm384, %v378, %v391
        %v393 = vld [vmem:[%s5] sm:$0xf]
        %v394 = vld [vmem:[%s5 + $0x4] sm:$0xf]
        %v395 = vld [vmem:[%s5 + $0x8] sm:$0xf]
        %v396 = vld [vmem:[%s5 + $0xc] sm:$0xf]
        %v397 = vld [vmem:[%s5 + $0x10] sm:$0xf]
        %v398 = vld [vmem:[%s5 + $0x14] sm:$0xf]
        %v399 = vld [vmem:[%s6] sm:$0x1]
        %v401 = vrot.slane %v392, 7
        %v403 = vsel %vm297, 0.0, %v401
        %v404 = vrot.slane %v392, 1
        %v406 = vsel %vm301, %v404, 0.0
        %407 = vrot.lane.b32.xlu0 %v392, 16
        %v408 = vpop.permute.xlu0 %407
        %411 = vrot.lane.b32.xlu0 %v406, 32
        %v412 = vpop.permute.xlu0 %411
        %v414 = vsel %vm310, %v403, %v408
        %v415 = vsel %vm312, %v414, %v412
        %v416 = vpack.c.bf16 %v415, %v415
        %v418 = vlaneseq
        %v419 = vshrl.u32 %v418, 7
        %v420 = vsub.s32 0, %v419
        %v421 = vrot.slane %v399, %v420
        %v429 = vunpack.c.l.b16 %v393
        %v430 = vunpack.c.l.b16 %v394
        %v431 = vunpack.c.l.b16 %v395
        %v432 = vunpack.c.l.b16 %v396
        %v433 = vunpack.c.l.b16 %v397
        %v434 = vunpack.c.l.b16 %v398
        %v435 = vpack.c.b16 %v430, %v429
        %v436 = vpack.c.b16 %v432, %v431
        %v437 = vpack.c.b16 %v434, %v433
        %v442 = vsel %vm339, %v416, 0
        %444 = vmatprep.subr.bf16.mxu0 0
        %445 = vmatpush1.bf16.msra.mxu0 %v435
        %446 = vmatprep.subr.bf16.mxu0 0
        %447 = vmatpush1.bf16.msra.mxu0 %v436
        %448 = vmatprep.subr.bf16.mxu0 0
        %449 = vmatpush1.bf16.msra.mxu0 %v437
        %450 = vmatprep.subr.bf16.mxu0 0
        %451 = vmatpush1.bf16.msra.mxu0 0
        %452 = vmatprep.subr.bf16.mxu0 0
        %453 = vmatpush1.bf16.msra.mxu0 0
        %454 = vmatprep.subr.bf16.mxu0 0
        %455 = vmatpush1.bf16.msra.mxu0 0
        %456 = vmatprep.subr.bf16.mxu0 0
        %457 = vmatpush1.bf16.msra.mxu0 0
        %458 = vmatprep.subr.bf16.mxu0 0
        %459 = vmatpush1.bf16.msra.mxu0 0
        %460 = vmatprep.subr.bf16.mxu0 0
        %461 = vmatpush1.bf16.msra.mxu0 0
        %462 = vmatprep.subr.bf16.mxu0 0
        %463 = vmatpush1.bf16.msra.mxu0 0
        %464 = vmatprep.subr.bf16.mxu0 0
        %465 = vmatpush1.bf16.msra.mxu0 0
        %466 = vmatprep.subr.bf16.mxu0 0
        %467 = vmatpush1.bf16.msra.mxu0 0
        %468 = vmatprep.subr.bf16.mxu0 0
        %469 = vmatpush1.bf16.msra.mxu0 0
        %470 = vmatprep.subr.bf16.mxu0 0
        %471 = vmatpush1.bf16.msra.mxu0 0
        %472 = vmatprep.subr.bf16.mxu0 0
        %473 = vmatpush1.bf16.msra.mxu0 0
        %474 = vmatprep.subr.bf16.mxu0 0
        %475 = vmatpush1.bf16.msra.mxu0 0
        %476 = vmatprep.mubr.bf16.mxu0 0
        %477 = vmatmul.mubr.bf16.gmra.mrb[0].mxu0 %v442
        %v478 = vpop.f32.mrb[0].mxu0
        %v479 = vadd.f32 %v421, %v478
        %v480 = vpop.f32.mrb[0].mxu0
        %v481 = vpop.f32.mrb[0].mxu0
        %v482 = vpop.f32.mrb[0].mxu0
        %483 = vdwg.mxu0
        %v484 = vadd.f32 %v276, %v479
        %v485 = vpack.c.bf16 %v484, %v484
        %vm486 = vcmask 125952
        %487 = vst.msk [vmem:[%s269] sm:$0xf] %vm486, %v485
        %s488 = sand.u32 %s181, 1
        %s489 = scalar_lea.sflag [#allocation3], %s488
        %s490 = sand.u32 %s181, 1
        %s491 = smul.addr %s490, 4
        %s492 = scalar_lea.vmem [#allocation2], %s491
        // Predicated region
        $region49: #{tpu_custom_call.1} parent=47 // pred_check
          %p493 = pneg %p191
        $region50: #{tpu_custom_call.1} parent=47 // pred_check_branch
          %495 = sbr.rel (%p493) target = $region52
        $region51: #{tpu_custom_call.1} parent=47 // pred_region
          %s497 = ssub.s32 64, 64
          %498 = vsyncadd %s489, %s497
          %s499 = smul.addr %s21, 64
          %s500 = scalar_lea.hbm %s7, %s499
          %s502 = sshll.u32 %s492, 4
          %s503 = int_to_ptr.vmem [resolvable:$true] %s502
          %505 = dma.vmem_to_hbm [thread:$0]  %s503, 64, %s500, %s489
        $region52: #{tpu_custom_call.1} parent=47 // pred_fallthru
          _
      $region48: #{tpu_custom_call.1} parent=5 // pred_fallthru
        _
      %p506 = scmp.le.s32.totalorder 2, %s16
      // Predicated region
      $region53: #{tpu_custom_call.1} parent=5 // pred_check
        %p507 = pneg %p506
      $region54: #{tpu_custom_call.1} parent=5 // pred_check_branch
        %509 = sbr.rel (%p507) target = $region56
      $region55: #{tpu_custom_call.1} parent=5 // pred_region
        %s510 = ssub.s32 %s16, 2
        // Predicated region
        $region57: #{tpu_custom_call.1} parent=55 // pred_check
          %p511 = pneg %p197
        $region58: #{tpu_custom_call.1} parent=55 // pred_check_branch
          %513 = sbr.rel (%p511) target = $region60
        $region59: #{tpu_custom_call.1} parent=55 // pred_region
          %s514 = sand.u32 %s182, 1
          %s515 = scalar_lea.sflag [#allocation3], %s514
          %s516 = sand.u32 %s182, 1
          %s517 = smul.addr %s516, 4
          %s518 = scalar_lea.vmem [#allocation2], %s517
          %519 = dma.done %s515, 64
        $region60: #{tpu_custom_call.1} parent=55 // pred_fallthru
          _
      $region56: #{tpu_custom_call.1} parent=5 // pred_fallthru
        _
    $region6: #{tpu_custom_call.1} parent=1 // loop_footer
      %s20 = sadd.s32 1, %s16
    $region7: #{tpu_custom_call.1} parent=1 // loop_footer_branch
      %15 = sbr.rel target = $region3
    $region8: #{tpu_custom_call.1} parent=1 // loop_exit
      _
    %520 = vsyncpa [#allocation3], 1
    %s521 = scalar_lea.sflag [#allocation3], 1
    %522 = vsyncpa %s521, 1

</llo_original>
